<compile_context>
chip_gen: v5e
topology: v5e:2x2
jax: 0.10.0
libtpu: 0.0.40
codegen_flags: <defaults>
</compile_context>

<pallas_src>
import functools

import jax
import jax.numpy as jnp
from jax.experimental import pallas as pl
from jax.experimental.pallas import tpu as pltpu


def _round_up(a, b):
    return (a + b - 1) // b * b


def _min_sublane(dtype):
    # f32 -> 8, bf16 -> 16, int8/fp8 -> 32
    return max(8, 32 // jnp.dtype(dtype).itemsize)


@functools.lru_cache(maxsize=None)
def _vmem_capacity_bytes():
    """Physical per-core VMEM; conservative fallback if the query fails."""
    try:
        cap = int(pltpu.get_tpu_info().vmem_capacity_bytes)
        if cap > 0:
            return cap
    except Exception:  # pragma: no cover - query unavailable
        pass
    return 64 * 1024 * 1024  # v7x-sized conservative default


def _vmem_budget_bytes():
    # Use ~2/3 of physical VMEM; the rest is headroom for Mosaic internal
    # scratch, semaphores and register spills.
    return (_vmem_capacity_bytes() * 2) // 3


def _choose_tile(dim, unit, max_tile, floor):
    """Return (tile, padded_dim): tile % unit == 0, padded_dim % tile == 0.

    Prefers a divisor of the unit-padded size (no extra padding) but never
    collapses below `floor`; if no divisor >= floor exists, pad up to a
    multiple of `max_tile` and accept the padding waste (keeps MXU-shaped
    tiles and a small grid instead of hundreds of tiny steps).
    """
    p = _round_up(dim, unit)
    if p <= max_tile:
        return p, p
    for t in range(max_tile, floor - 1, -unit):
        if p % t == 0:
            return t, p
    t = max_tile
    return t, _round_up(dim, t)


def _linear_kernel_fullk(x_ref, b_ref, o_ref):
    # Whole K reduction in one MXU call: no accumulator, no revisits.
    o_ref[...] = jnp.dot(
        x_ref[...], b_ref[...], preferred_element_type=jnp.float32
    ).astype(o_ref.dtype)


def _linear_kernel_ksplit(x_ref, b_ref, o_ref, acc_ref):
    # Fallback for very large K: K-last reduction with f32 accumulator.
    @pl.when(pl.program_id(2) == 0)
    def _():
        acc_ref[...] = jnp.zeros_like(acc_ref)

    acc_ref[...] += jnp.dot(
        x_ref[...], b_ref[...], preferred_element_type=jnp.float32
    )

    @pl.when(pl.program_id(2) == pl.num_programs(2) - 1)
    def _():
        o_ref[...] = acc_ref[...].astype(o_ref.dtype)


@jax.jit
def _matmul_pallas(x, b):
    """Y[M, N] = X[M, K] @ B[K, N] on the MXU (padding handles odd shapes)."""
    M, K = x.shape
    K2, N = b.shape
    assert K == K2
    dtype = x.dtype
    itemsize = jnp.dtype(dtype).itemsize
    sub = _min_sublane(dtype)

    budget = _vmem_budget_bytes()
    cap = _vmem_capacity_bytes()

    tm, Mp = _choose_tile(M, sub, 256, floor=64)
    Kp = _round_up(K, 128)

    def fullk_bytes(tn_, kp_):
        # Double-buffered x, b and out tiles.
        return 2 * (tm * kp_ + kp_ * tn_ + tm * tn_) * itemsize

    # Lane-dense output slab; try wider tiles first when VMEM allows
    # (v5e/v6e 128 MiB), narrower before giving up on the full-K path.
    tn_caps = (1024, 512, 256, 128) if budget >= (64 << 20) else (512, 256, 128)
    use_fullk = False
    tn, Np = _choose_tile(N, 128, tn_caps[-1], floor=128)
    for cap_n in tn_caps:
        tn_try, Np_try = _choose_tile(N, 128, cap_n, floor=128)
        if fullk_bytes(tn_try, Kp) <= budget:
            tn, Np, use_fullk = tn_try, Np_try, True
            break

    if use_fullk and (Mp // tm) * (Np // tn) < 2 and Np >= 256:
        # Keep >= 2 blocks on a parallel axis so both v7x TensorCores get
        # work (costs only one extra ~0.35us grid step on single-TC chips).
        for t in range((Np // 2) // 128 * 128, 127, -128):
            if Np % t == 0:
                tn = t
                break

    if not use_fullk:
        # K-split fallback: big K tiles (up to 2048) cut revisit steps and
        # accumulator read-modify-write traffic, while limiting pad waste.
        def ksplit_bytes(tk_):
            return (2 * (tm * tk_ + tk_ * tn + tm * tn) * itemsize
                    + tm * tn * 4)  # + f32 accumulator scratch

        tk = 128
        for cand in (2048, 1024, 512, 256, 128):
            pad_ok = _round_up(K, cand) * 4 <= _round_up(K, 128) * 5  # <=25% waste
            if ksplit_bytes(cand) <= budget and (pad_ok or cand == 128):
                tk = cand
                break
        Kp = _round_up(K, tk)

    # Zero-pad to tile multiples (zeros along K contribute nothing to the dot).
    if (Mp, Kp) != (M, K):
        x = jnp.pad(x, ((0, Mp - M), (0, Kp - K)))
    if (Kp, Np) != (K, N):
        b = jnp.pad(b, ((0, Kp - K), (0, Np - N)))

    if use_fullk:
        work_bytes = fullk_bytes(tn, Kp)
        vmem_limit = int(min(cap, max(32 << 20, work_bytes + (16 << 20))))
        out = pl.pallas_call(
            _linear_kernel_fullk,
            out_shape=jax.ShapeDtypeStruct((Mp, Np), dtype),
            grid_spec=pltpu.PrefetchScalarGridSpec(
                num_scalar_prefetch=0,
                # N (weight) axis OUTER: the weight block index only changes
                # with j, so each W slab is DMA'd exactly once while the
                # inner M axis streams activation tiles.
                grid=(Np // tn, Mp // tm),
                in_specs=[
                    pl.BlockSpec((tm, Kp), lambda j, i: (i, 0)),
                    pl.BlockSpec((Kp, tn), lambda j, i: (0, j)),
                ],
                out_specs=pl.BlockSpec((tm, tn), lambda j, i: (i, j)),
            ),
            compiler_params=pltpu.CompilerParams(
                dimension_semantics=("parallel", "parallel"),
                vmem_limit_bytes=vmem_limit,
            ),
        )(x, b)
    else:
        work_bytes = (2 * (tm * tk + tk * tn + tm * tn) * itemsize
                      + tm * tn * 4)
        vmem_limit = int(min(cap, max(32 << 20, work_bytes + (16 << 20))))
        out = pl.pallas_call(
            _linear_kernel_ksplit,
            out_shape=jax.ShapeDtypeStruct((Mp, Np), dtype),
            grid_spec=pltpu.PrefetchScalarGridSpec(
                num_scalar_prefetch=0,
                grid=(Mp // tm, Np // tn, Kp // tk),
                in_specs=[
                    pl.BlockSpec((tm, tk), lambda i, j, k: (i, k)),
                    pl.BlockSpec((tk, tn), lambda i, j, k: (k, j)),
                ],
                out_specs=pl.BlockSpec((tm, tn), lambda i, j, k: (i, j)),
                scratch_shapes=[pltpu.VMEM((tm, tn), jnp.float32)],
            ),
            compiler_params=pltpu.CompilerParams(
                dimension_semantics=("parallel", "parallel", "arbitrary"),
                vmem_limit_bytes=vmem_limit,
            ),
        )(x, b)

    if (Mp, Np) != (M, N):
        out = out[:M, :N]
    return out


class CustomOrthogonalLayer:
    """JAX/Pallas port of the PyTorch CustomOrthogonalLayer."""

    def __init__(self, size, dtype, key, compute_dtype=None):
        self.size = size
        self.dtype = dtype
        # Optional lower-precision MXU inputs (f32 accumulation stays).
        self.compute_dtype = compute_dtype if compute_dtype is not None else dtype
        matrix = jax.random.normal(key, (size, size), dtype=jnp.float32)
        q, _ = jnp.linalg.qr(matrix)  # orthogonal init (host glue, not hot path)
        self.weight = q.astype(dtype)                    # (out_features, in_features)
        w_c = self.weight.astype(self.compute_dtype)
        self._w = jnp.asarray(w_c)                       # for transpose=True  (x @ W)
        self._w_t = jnp.asarray(w_c.T)                   # for transpose=False (x @ W.T)
        _vmem_capacity_bytes()  # warm the hardware-info cache outside jit

    def __call__(self, x, transpose=False):
        # F.linear(x, W)   = x @ W.T   (transpose=False)
        # F.linear(x, W.T) = x @ W     (transpose=True)
        b = self._w if transpose else self._w_t
        x = x.astype(self.compute_dtype)
        lead = x.shape[:-1]
        # Flatten ALL leading dims (time x batch) into one matmul: the weight
        # is DMA'd once per call rather than once per timestep.
        y = _matmul_pallas(x.reshape(-1, x.shape[-1]), b)
        return y.reshape(*lead, b.shape[-1])


if __name__ == "__main__":
    key = jax.random.PRNGKey(0)
    k_w, k_x, k_w2, k_x2, k_w3, k_x3 = jax.random.split(key, 6)

    # Hot-path shape for the RNN: size=128 hidden, T=16 timesteps x batch=8,
    # all timesteps fused into one pallas_call.
    size, T, batch = 128, 16, 8
    layer = CustomOrthogonalLayer(size, jnp.float32, k_w)
    xs = jax.random.normal(k_x, (T, batch, size), dtype=jnp.float32)

    y = layer(xs, transpose=False)     # x @ W.T
    y_t = layer(xs, transpose=True)    # x @ W
    jax.block_until_ready((y, y_t))

    ref = xs @ layer.weight.T
    ref_t = xs @ layer.weight
    assert y.shape == (T, batch, size)
    assert jnp.allclose(y, ref, atol=1e-4, rtol=1e-4)
    assert jnp.allclose(y_t, ref_t, atol=1e-4, rtol=1e-4)
    # Orthogonality sanity: W then W^T recovers x.
    assert jnp.allclose(layer(layer(xs), transpose=True), xs, atol=1e-3, rtol=1e-3)

    # Exercise the padding path with non-(8,128)-divisible shapes.
    size2, batch2 = 100, 5
    layer2 = CustomOrthogonalLayer(size2, jnp.float32, k_w2)
    x2 = jax.random.normal(k_x2, (batch2, size2), dtype=jnp.float32)
    y2 = layer2(x2, transpose=False)
    y2_t = layer2(x2, transpose=True)
    jax.block_until_ready((y2, y2_t))
    assert jnp.allclose(y2, x2 @ layer2.weight.T, atol=1e-4, rtol=1e-4)
    assert jnp.allclose(y2_t, x2 @ layer2.weight, atol=1e-4, rtol=1e-4)

    # Exercise bf16 MXU inputs (f32 accumulation) and the >=2-parallel-block
    # split used to feed both v7x TensorCores.
    size3, batch3 = 256, 8
    layer3 = CustomOrthogonalLayer(size3, jnp.float32, k_w3,
                                   compute_dtype=jnp.bfloat16)
    x3 = jax.random.normal(k_x3, (batch3, size3), dtype=jnp.float32)
    y3 = layer3(x3, transpose=False)
    y3_t = layer3(x3, transpose=True)
    jax.block_until_ready((y3, y3_t))
    assert jnp.allclose(y3.astype(jnp.float32), x3 @ layer3.weight.T,
                        atol=5e-2, rtol=5e-2)
    assert jnp.allclose(y3_t.astype(jnp.float32), x3 @ layer3.weight,
                        atol=5e-2, rtol=5e-2)

    print("KERNEL_OK")
</pallas_src>

<mosaic_0001>
module attributes {stable_mosaic.version = 11 : i64} {
  func.func @_linear_kernel_fullk(%arg0: i32, %arg1: i32, %arg2: memref<128x128xf32, #tpu.memory_space<vmem>>, %arg3: memref<128x128xf32, #tpu.memory_space<vmem>>, %arg4: memref<128x128xf32, #tpu.memory_space<vmem>>) attributes {dimension_semantics = [#tpu.dimension_semantics<parallel>, #tpu.dimension_semantics<parallel>], iteration_bounds = array<i64: 1, 1>, scalar_prefetch = 0 : i64, scratch_operands = 0 : i64, tpu.core_type = #tpu.core_type<tc>, window_params = [{transform_indices = @transform_0, window_bounds = array<i64: 128, 128>}, {transform_indices = @transform_1, window_bounds = array<i64: 128, 128>}, {transform_indices = @transform_2, window_bounds = array<i64: 128, 128>}]} {
    %c0 = arith.constant 0 : index
    %c0_0 = arith.constant 0 : index
    %0 = vector.load %arg2[%c0, %c0_0] : memref<128x128xf32, #tpu.memory_space<vmem>>, vector<128x128xf32>
    %c0_1 = arith.constant 0 : index
    %c0_2 = arith.constant 0 : index
    %1 = vector.load %arg3[%c0_1, %c0_2] : memref<128x128xf32, #tpu.memory_space<vmem>>, vector<128x128xf32>
    %cst = arith.constant dense<0.000000e+00> : vector<128x128xf32>
    %2 = tpu.matmul %0, %1, %cst {dimension_numbers = #tpu.dot_dimension_numbers<[1], [0], [0], [1], [0, 0, 1, 1], [], []>} : vector<128x128xf32>, vector<128x128xf32>, vector<128x128xf32> -> vector<128x128xf32>
    %c0_3 = arith.constant 0 : index
    %c0_4 = arith.constant 0 : index
    %3 = vector.load %arg4[%c0_3, %c0_4] : memref<128x128xf32, #tpu.memory_space<vmem>>, vector<128x128xf32>
    tpu.vector_store %arg4[%c0_3, %c0_4], %2 {strides = array<i32>} : memref<128x128xf32, #tpu.memory_space<vmem>>, vector<128x128xf32>,
    return
  }
  func.func @transform_0(%arg0: i32, %arg1: i32) -> (i32, i32) {
    %c0_i32 = arith.constant 0 : i32
    %c0_i32_0 = arith.constant 0 : i32
    return %arg1, %c0_i32 : i32, i32
  }
  func.func @transform_1(%arg0: i32, %arg1: i32) -> (i32, i32) {
    %c0_i32 = arith.constant 0 : i32
    %c0_i32_0 = arith.constant 0 : i32
    return %c0_i32, %arg0 : i32, i32
  }
  func.func @transform_2(%arg0: i32, %arg1: i32) -> (i32, i32) {
    %c0_i32 = arith.constant 0 : i32
    return %arg1, %arg0 : i32, i32
  }
}

</mosaic_0001>

<llo_original>
// kernel: _matmul_pallas.1
$region0: #{_matmul_pallas.1}
  #allocation0 [shape = 'u32[]', space=smem, size = 0x4, offset = 0x4, fixed_abs, tag = 'smem constant byte address 0x4 - core index']
  #allocation1 [shape = 'u32[72,128]{1,0:T(1,128)}', space=vmem, size = 0x9000, scoped, tag = 'internal scratch']
  %s0 = inlined_call_operand.hbm [shape: f32[128,128], index: 0, kind: input, shape index: {}]
  %s1 = inlined_call_operand.hbm [shape: f32[128,128], index: 1, kind: input, shape index: {}]
  %s2 = inlined_call_operand.hbm [shape: f32[128,128], index: 2, kind: output, shape index: {}]
  %s3 = sld [smem:[#allocation0]]
  $region26: #{_matmul_pallas.1} parent=0
    _
  %s5 = ssub.s32 1, %s3
  %s6 = scalar_select 0, %s5, %s3
  $region1: #{_matmul_pallas.1} parent=0
    #allocation2 [shape = 'u8[65536]{0}', space=vmem, size = 0x10000, scoped, tag = 'input window, operand 0, single buffered']
    #allocation3 [shape = 's32[1]{0}', space=sflag, size = 0x4, scoped, tag = 'scoped memory for _matmul_pallas.1']
    #allocation4 [shape = 's32[1]{0}', space=sflag, size = 0x4, scoped, tag = 'scoped memory for _matmul_pallas.1']
    #allocation5 [shape = 'u8[65536]{0}', space=vmem, size = 0x10000, scoped, tag = 'input window, operand 1, single buffered']
    #allocation6 [shape = 's32[1]{0}', space=sflag, size = 0x4, scoped, tag = 'scoped memory for _matmul_pallas.1']
    #allocation7 [shape = 'u8[65536]{0}', space=vmem, size = 0x10000, scoped, tag = 'output window, operand 0, single buffered']
    %7 = vsyncpa [#allocation3], 0
    %8 = vsyncpa [#allocation6], 0
    %9 = vsyncpa [#allocation4], 0
    // Predicated region
    $region2: #{_matmul_pallas.1} parent=1 // pred_check
      _
    $region3: #{_matmul_pallas.1} parent=1 // pred_check_branch
      %11 = sbr.rel (0) target = $region5
    $region4: #{_matmul_pallas.1} parent=1 // pred_region
      %13 = vsyncadd [#allocation3], 0
      %s14 = sshll.u32 %s0, 4
      %s15 = int_to_ptr.hbm [resolvable:$true] %s14
      %s16 = sshll.u32 [#allocation2], 4
      %s17 = int_to_ptr.vmem [resolvable:$true] %s16
      %22 = dma.hbm_to_vmem [thread:$0]  %s15, 2048, %s17, [#allocation3], 128, 128, 8
    $region5: #{_matmul_pallas.1} parent=1 // pred_fallthru
      _
    // Predicated region
    $region6: #{_matmul_pallas.1} parent=1 // pred_check
      _
    $region7: #{_matmul_pallas.1} parent=1 // pred_check_branch
      %24 = sbr.rel (0) target = $region9
    $region8: #{_matmul_pallas.1} parent=1 // pred_region
      %26 = vsyncadd [#allocation6], 0
      %s27 = sshll.u32 %s1, 4
      %s28 = int_to_ptr.hbm [resolvable:$true] %s27
      %s29 = sshll.u32 [#allocation5], 4
      %s30 = int_to_ptr.vmem [resolvable:$true] %s29
      %35 = dma.hbm_to_vmem [thread:$0]  %s28, 2048, %s30, [#allocation6], 128, 128, 8
    $region9: #{_matmul_pallas.1} parent=1 // pred_fallthru
      _
    // Predicated region
    $region10: #{_matmul_pallas.1} parent=1 // pred_check
      _
    $region11: #{_matmul_pallas.1} parent=1 // pred_check_branch
      %37 = sbr.rel (0) target = $region13
    $region12: #{_matmul_pallas.1} parent=1 // pred_region
      %39 = dma.done [#allocation3], 2048
    $region13: #{_matmul_pallas.1} parent=1 // pred_fallthru
      _
    // Predicated region
    $region14: #{_matmul_pallas.1} parent=1 // pred_check
      _
    $region15: #{_matmul_pallas.1} parent=1 // pred_check_branch
      %41 = sbr.rel (0) target = $region17
    $region16: #{_matmul_pallas.1} parent=1 // pred_region
      %43 = dma.done [#allocation6], 2048
    $region17: #{_matmul_pallas.1} parent=1 // pred_fallthru
      _
    %v44 = vld [vmem:[#allocation2] sm:$0xff]
    %v45 = vld [vmem:[#allocation2 + $0x8] sm:$0xff]
    %v46 = vld [vmem:[#allocation2 + $0x10] sm:$0xff]
    %v47 = vld [vmem:[#allocation2 + $0x18] sm:$0xff]
    %v48 = vld [vmem:[#allocation2 + $0x20] sm:$0xff]
    %v49 = vld [vmem:[#allocation2 + $0x28] sm:$0xff]
    %v50 = vld [vmem:[#allocation2 + $0x30] sm:$0xff]
    %v51 = vld [vmem:[#allocation2 + $0x38] sm:$0xff]
    %v52 = vld [vmem:[#allocation2 + $0x40] sm:$0xff]
    %v53 = vld [vmem:[#allocation2 + $0x48] sm:$0xff]
    %v54 = vld [vmem:[#allocation2 + $0x50] sm:$0xff]
    %v55 = vld [vmem:[#allocation2 + $0x58] sm:$0xff]
    %v56 = vld [vmem:[#allocation2 + $0x60] sm:$0xff]
    %v57 = vld [vmem:[#allocation2 + $0x68] sm:$0xff]
    %v58 = vld [vmem:[#allocation2 + $0x70] sm:$0xff]
    %v59 = vld [vmem:[#allocation2 + $0x78] sm:$0xff]
    %v60 = vld [vmem:[#allocation5] sm:$0xff]
    %v61 = vld [vmem:[#allocation5 + $0x8] sm:$0xff]
    %v62 = vld [vmem:[#allocation5 + $0x10] sm:$0xff]
    %v63 = vld [vmem:[#allocation5 + $0x18] sm:$0xff]
    %v64 = vld [vmem:[#allocation5 + $0x20] sm:$0xff]
    %v65 = vld [vmem:[#allocation5 + $0x28] sm:$0xff]
    %v66 = vld [vmem:[#allocation5 + $0x30] sm:$0xff]
    %v67 = vld [vmem:[#allocation5 + $0x38] sm:$0xff]
    %v68 = vld [vmem:[#allocation5 + $0x40] sm:$0xff]
    %v69 = vld [vmem:[#allocation5 + $0x48] sm:$0xff]
    %v70 = vld [vmem:[#allocation5 + $0x50] sm:$0xff]
    %v71 = vld [vmem:[#allocation5 + $0x58] sm:$0xff]
    %v72 = vld [vmem:[#allocation5 + $0x60] sm:$0xff]
    %v73 = vld [vmem:[#allocation5 + $0x68] sm:$0xff]
    %v74 = vld [vmem:[#allocation5 + $0x70] sm:$0xff]
    %v75 = vld [vmem:[#allocation5 + $0x78] sm:$0xff]
    %76 = vmatpush.msra.mxu0 %v75
    %77 = vmatpush.msra.mxu0 %v74
    %78 = vmatpush.msra.mxu0 %v73
    %79 = vmatpush.msra.mxu0 %v72
    %80 = vmatpush.msra.mxu0 %v71
    %81 = vmatpush.msra.mxu0 %v70
    %82 = vmatpush.msra.mxu0 %v69
    %83 = vmatpush.msra.mxu0 %v68
    %84 = vmatpush.msra.mxu0 %v67
    %85 = vmatpush.msra.mxu0 %v66
    %86 = vmatpush.msra.mxu0 %v65
    %87 = vmatpush.msra.mxu0 %v64
    %88 = vmatpush.msra.mxu0 %v63
    %89 = vmatpush.msra.mxu0 %v62
    %90 = vmatpush.msra.mxu0 %v61
    %91 = vmatpush.msra.mxu0 %v60
    %92 = vmatmul.f32.gmra.mxu0 %v44
    %v93 = vpop.f32.mrf.mxu0
    %v94 = vadd.f32 0.0, %v93
    %95 = vmatmul.f32.gmra.mxu0 %v45
    %v96 = vpop.f32.mrf.mxu0
    %v97 = vadd.f32 0.0, %v96
    %98 = vmatmul.f32.gmra.mxu0 %v46
    %v99 = vpop.f32.mrf.mxu0
    %v100 = vadd.f32 0.0, %v99
    %101 = vmatmul.f32.gmra.mxu0 %v47
    %v102 = vpop.f32.mrf.mxu0
    %v103 = vadd.f32 0.0, %v102
    %104 = vmatmul.f32.gmra.mxu0 %v48
    %v105 = vpop.f32.mrf.mxu0
    %v106 = vadd.f32 0.0, %v105
    %107 = vmatmul.f32.gmra.mxu0 %v49
    %v108 = vpop.f32.mrf.mxu0
    %v109 = vadd.f32 0.0, %v108
    %110 = vmatmul.f32.gmra.mxu0 %v50
    %v111 = vpop.f32.mrf.mxu0
    %v112 = vadd.f32 0.0, %v111
    %113 = vmatmul.f32.gmra.mxu0 %v51
    %v114 = vpop.f32.mrf.mxu0
    %v115 = vadd.f32 0.0, %v114
    %116 = vmatmul.f32.gmra.mxu0 %v52
    %v117 = vpop.f32.mrf.mxu0
    %v118 = vadd.f32 0.0, %v117
    %119 = vmatmul.f32.gmra.mxu0 %v53
    %v120 = vpop.f32.mrf.mxu0
    %v121 = vadd.f32 0.0, %v120
    %122 = vmatmul.f32.gmra.mxu0 %v54
    %v123 = vpop.f32.mrf.mxu0
    %v124 = vadd.f32 0.0, %v123
    %125 = vmatmul.f32.gmra.mxu0 %v55
    %v126 = vpop.f32.mrf.mxu0
    %v127 = vadd.f32 0.0, %v126
    %128 = vmatmul.f32.gmra.mxu0 %v56
    %v129 = vpop.f32.mrf.mxu0
    %v130 = vadd.f32 0.0, %v129
    %131 = vmatmul.f32.gmra.mxu0 %v57
    %v132 = vpop.f32.mrf.mxu0
    %v133 = vadd.f32 0.0, %v132
    %134 = vmatmul.f32.gmra.mxu0 %v58
    %v135 = vpop.f32.mrf.mxu0
    %v136 = vadd.f32 0.0, %v135
    %137 = vmatmul.f32.gmra.mxu0 %v59
    %v138 = vpop.f32.mrf.mxu0
    %v139 = vadd.f32 0.0, %v138
    %140 = vdwg.mxu0
    %141 = vst [vmem:[#allocation7] sm:$0xff] %v94
    %142 = vst [vmem:[#allocation7 + $0x8] sm:$0xff] %v97
    %143 = vst [vmem:[#allocation7 + $0x10] sm:$0xff] %v100
    %144 = vst [vmem:[#allocation7 + $0x18] sm:$0xff] %v103
    %145 = vst [vmem:[#allocation7 + $0x20] sm:$0xff] %v106
    %146 = vst [vmem:[#allocation7 + $0x28] sm:$0xff] %v109
    %147 = vst [vmem:[#allocation7 + $0x30] sm:$0xff] %v112
    %148 = vst [vmem:[#allocation7 + $0x38] sm:$0xff] %v115
    %149 = vst [vmem:[#allocation7 + $0x40] sm:$0xff] %v118
    %150 = vst [vmem:[#allocation7 + $0x48] sm:$0xff] %v121
    %151 = vst [vmem:[#allocation7 + $0x50] sm:$0xff] %v124
    %152 = vst [vmem:[#allocation7 + $0x58] sm:$0xff] %v127
    %153 = vst [vmem:[#allocation7 + $0x60] sm:$0xff] %v130
    %154 = vst [vmem:[#allocation7 + $0x68] sm:$0xff] %v133
    %155 = vst [vmem:[#allocation7 + $0x70] sm:$0xff] %v136
    %156 = vst [vmem:[#allocation7 + $0x78] sm:$0xff] %v139
    // Predicated region
    $region18: #{_matmul_pallas.1} parent=1 // pred_check
      _
    $region19: #{_matmul_pallas.1} parent=1 // pred_check_branch
      %158 = sbr.rel (0) target = $region21
    $region20: #{_matmul_pallas.1} parent=1 // pred_region
      %160 = vsyncadd [#allocation4], 0
      %s161 = sshll.u32 [#allocation7], 4
      %s162 = int_to_ptr.vmem [resolvable:$true] %s161
      %s163 = sshll.u32 %s2, 4
      %s164 = int_to_ptr.hbm [resolvable:$true] %s163
      %169 = dma.vmem_to_hbm [thread:$0]  %s162, 2048, %s164, [#allocation4], 128, 128, 8
    $region21: #{_matmul_pallas.1} parent=1 // pred_fallthru
      _
    // Predicated region
    $region22: #{_matmul_pallas.1} parent=1 // pred_check
      _
    $region23: #{_matmul_pallas.1} parent=1 // pred_check_branch
      %171 = sbr.rel (0) target = $region25
    $region24: #{_matmul_pallas.1} parent=1 // pred_region
      %173 = dma.done [#allocation4], 2048
    $region25: #{_matmul_pallas.1} parent=1 // pred_fallthru
      _
    %174 = vsyncpa [#allocation3], 1
    %175 = vsyncpa [#allocation6], 1
    %176 = vsyncpa [#allocation4], 1

</llo_original>
